<compile_context>
chip_gen: v6e
topology: v6e:2x2x1
jax: 0.10.0
libtpu: 0.0.40
codegen_flags: <defaults>
</compile_context>

<pallas_src>
import functools

import jax
import jax.numpy as jnp
from jax.experimental import pallas as pl
from jax.experimental.pallas import tpu as pltpu


def _spatial_attn_kernel(x_ref, w_ref, o_ref, *, L, K, use_roll):
    """One batch tile per grid step.

    x_ref: (Bt, C, L) VMEM  -- raw input tile (no padding, native dtype)
    w_ref: (2*K,)     SMEM  -- [w_avg/C taps (0..K-1), w_max taps (0..K-1)], f32
    o_ref: (Bt, L)    VMEM  -- sigmoid(conv) output rows
    """
    pad = K // 2
    x = x_ref[...]                                    # native dtype, no full-block upcast

    # Channel reduction over the sublane axis; accumulate in f32 (1/C folded into taps).
    s = jnp.sum(x, axis=1, dtype=jnp.float32)         # (Bt, L) == C * mean
    m = jnp.max(x, axis=1).astype(jnp.float32)        # (Bt, L)

    bt = s.shape[0]
    acc = jnp.zeros((bt, L), jnp.float32)

    if use_roll:
        # Lane-aligned path: shifted windows via XLU rolls + edge masks (no realigned
        # VMEM copies per tap).
        lane = jax.lax.broadcasted_iota(jnp.int32, (1, L), 1)
        for k in range(K):
            t_k = w_ref[k] * s + w_ref[K + k] * m     # combined per-tap contribution
            shifted = pltpu.roll(t_k, shift=(pad - k) % L, axis=-1)
            valid = (lane >= (pad - k)) & (lane < (L + pad - k))
            acc = acc + jnp.where(valid, shifted, jnp.float32(0))
    else:
        # Fallback (tiny / unaligned L): re-create the conv's zero padding on the
        # already channel-reduced rows only (in-register) and slice shifted windows.
        if pad > 0:
            z = jnp.zeros((bt, pad), jnp.float32)
            s_p = jnp.concatenate([z, s, z], axis=-1)
            m_p = jnp.concatenate([z, m, z], axis=-1)
        else:
            s_p, m_p = s, m
        for k in range(K):
            acc = acc + w_ref[k] * s_p[:, k:k + L] + w_ref[K + k] * m_p[:, k:k + L]

    o_ref[...] = jax.nn.sigmoid(acc).astype(o_ref.dtype)


def _vmem_capacity_bytes():
    """Physical VMEM per TensorCore; conservative (v7x) fallback if query fails."""
    try:
        return int(pltpu.get_tpu_info().vmem_capacity_bytes)
    except Exception:
        return 64 << 20


def _row_vmem_bytes(C, L, in_isz, out_isz):
    """Per-batch-row VMEM cost: 2x double-buffered input + 2x output
    + f32 channel-reduce temp + ~8 (1, L)-f32 conv-loop working tiles."""
    return 2 * C * L * in_isz + 2 * L * out_isz + C * L * 4 + 8 * L * 4


def _pick_batch_tile(N, C, L, in_isz, out_isz, vmem_cap):
    """Largest batch tile that stays under the VMEM/DMA budgets, respects the (8,128)
    layout rule on the output block, and leaves >=2 grid steps on larger batches."""
    in_row = C * L * in_isz
    row_vmem = _row_vmem_bytes(C, L, in_isz, out_isz)
    budget = max(row_vmem, vmem_cap // 2)         # footprint <= ~half physical VMEM
    dma_target = 8 << 20                          # HBM block sweet spot on all gens
    bt = min(N, budget // row_vmem, max(1, dma_target // max(in_row, 1)))
    bt = max(1, int(bt))
    if N >= 16:                                   # >=2 grid steps so v7x megacore can split
        bt = min(bt, -(-N // 2))
    if bt < N:                                    # out block (bt, L): sublane dim must be a
        bt = min(N, max(8, (bt // 8) * 8))        # multiple of 8 unless it spans all of N
    return int(bt), int(row_vmem)


def spatial_attention_pallas(x, weight):
    """x: (N, C, L); weight: (1, 2, K) Conv1d weight (no bias). Returns (N, 1, L)."""
    N, C, L = x.shape
    K = weight.shape[-1]
    if K % 2 != 1:
        raise ValueError(
            "Only odd kernel_size is supported: with even K, PyTorch's padding=K//2 "
            "changes the output length."
        )

    # Fold the 1/C of the channel mean into the "avg" taps; flatten to (2*K,) SMEM scalars.
    w = weight.reshape(2, K).astype(jnp.float32)
    w_flat = jnp.concatenate([w[0] / float(C), w[1]]).reshape(2 * K)

    in_isz = x.dtype.itemsize
    out_isz = in_isz                              # output dtype == input dtype
    vmem_cap = _vmem_capacity_bytes()
    bt, row_vmem = _pick_batch_tile(N, C, L, in_isz, out_isz, vmem_cap)
    grid = (pl.cdiv(N, bt),)                      # ragged last block masked by Pallas

    vmem_limit = int(min(vmem_cap, max(2 * bt * row_vmem, 16 << 20)))

    kernel = functools.partial(
        _spatial_attn_kernel, L=L, K=K, use_roll=(L % 128 == 0)
    )

    cost = pl.CostEstimate(
        flops=int(N * L * (2 * C + 4 * K)),
        transcendentals=int(N * L),
        bytes_accessed=int(N * C * L * in_isz + N * L * out_isz + 2 * K * 4),
    )

    out = pl.pallas_call(
        kernel,
        out_shape=jax.ShapeDtypeStruct((N, L), x.dtype),
        grid=grid,
        in_specs=[
            pl.BlockSpec((bt, C, L), lambda b: (b, 0, 0)),
            pl.BlockSpec(memory_space=pltpu.MemorySpace.SMEM),
        ],
        out_specs=pl.BlockSpec((bt, L), lambda b: (b, 0)),
        compiler_params=pltpu.CompilerParams(
            dimension_semantics=("parallel",),
            vmem_limit_bytes=vmem_limit,
        ),
        cost_estimate=cost,
    )(x, w_flat)

    return out.reshape(N, 1, L)


def _reference(x, weight):
    """Pure-JAX reference matching the PyTorch forward."""
    avg = jnp.mean(x, axis=1, keepdims=True)
    mx = jnp.max(x, axis=1, keepdims=True)
    cat = jnp.concatenate([avg, mx], axis=1)      # (N, 2, L)
    K = weight.shape[-1]
    out = jax.lax.conv_general_dilated(
        cat, weight,
        window_strides=(1,),
        padding=[(K // 2, K // 2)],
        dimension_numbers=("NCH", "OIH", "NCH"),
    )
    return jax.nn.sigmoid(out)


if __name__ == "__main__":
    key = jax.random.PRNGKey(0)
    kx, kw = jax.random.split(key)

    # Small shapes consistent with the module: batch=2, channels=4, length=16, K=7.
    N, C, L, K = 2, 4, 16, 7
    x = jax.random.normal(kx, (N, C, L), dtype=jnp.float32)

    # Deterministic Conv1d(2 -> 1, kernel_size=7, bias=False) weight,
    # PyTorch-style uniform init: bound = 1/sqrt(fan_in), fan_in = 2*K.
    bound = 1.0 / jnp.sqrt(2.0 * K)
    weight = jax.random.uniform(kw, (1, 2, K), dtype=jnp.float32,
                                minval=-bound, maxval=bound)

    out = jax.block_until_ready(spatial_attention_pallas(x, weight))
    ref = _reference(x, weight)

    assert out.shape == (N, 1, L)
    assert jnp.allclose(out, ref, atol=1e-5, rtol=1e-5), "mismatch vs reference"

    print("KERNEL_OK")
</pallas_src>

<mosaic_0001>
module attributes {stable_mosaic.version = 11 : i64} {
  func.func @_spatial_attn_kernel(%arg0: i32, %arg1: memref<2x4x16xf32, #tpu.memory_space<vmem>>, %arg2: memref<14xf32, #tpu.memory_space<smem>>, %arg3: memref<2x16xf32, #tpu.memory_space<vmem>>) attributes {dimension_semantics = [#tpu.dimension_semantics<parallel>], iteration_bounds = array<i64: 1>, scalar_prefetch = 0 : i64, scratch_operands = 0 : i64, tpu.core_type = #tpu.core_type<tc>, window_params = [{transform_indices = @transform_0, window_bounds = array<i64: 2, 4, 16>}, {transform_indices = @transform_1, window_bounds = array<i64: 14>}, {transform_indices = @transform_2, window_bounds = array<i64: 2, 16>}]} {
    %c0 = arith.constant 0 : index
    %c0_0 = arith.constant 0 : index
    %c0_1 = arith.constant 0 : index
    %0 = vector.load %arg1[%c0, %c0_0, %c0_1] : memref<2x4x16xf32, #tpu.memory_space<vmem>>, vector<2x4x16xf32>
    %cst = arith.constant dense<0.000000e+00> : vector<2x16xf32>
    %1 = vector.multi_reduction <add>, %0, %cst [1] : vector<2x4x16xf32> to vector<2x16xf32>
    %cst_2 = arith.constant dense<0xFF800000> : vector<2x16xf32>
    %2 = vector.multi_reduction <maximumf>, %0, %cst_2 [1] : vector<2x4x16xf32> to vector<2x16xf32>
    %cst_3 = arith.constant 0.000000e+00 : f32
    %3 = vector.broadcast %cst_3 : f32 to vector<2x16xf32>
    %cst_4 = arith.constant 0.000000e+00 : f32
    %4 = vector.broadcast %cst_4 : f32 to vector<2x3xf32>
    %5 = tpu.concatenate %4, %1, %4 in 1 : vector<2x3xf32>, vector<2x16xf32>, vector<2x3xf32> -> vector<2x22xf32>
    %6 = tpu.concatenate %4, %2, %4 in 1 : vector<2x3xf32>, vector<2x16xf32>, vector<2x3xf32> -> vector<2x22xf32>
    %c0_5 = arith.constant 0 : index
    %7 = memref.load %arg2[%c0_5] : memref<14xf32, #tpu.memory_space<smem>>
    %8 = vector.extract_strided_slice %5 {offsets = [0, 0], sizes = [2, 16], strides = [1, 1]} : vector<2x22xf32> to vector<2x16xf32>
    %9 = vector.broadcast %7 : f32 to vector<2x16xf32>
    %10 = arith.mulf %9, %8 : vector<2x16xf32>
    %11 = arith.addf %3, %10 : vector<2x16xf32>
    %c7 = arith.constant 7 : index
    %12 = memref.load %arg2[%c7] : memref<14xf32, #tpu.memory_space<smem>>
    %13 = vector.extract_strided_slice %6 {offsets = [0, 0], sizes = [2, 16], strides = [1, 1]} : vector<2x22xf32> to vector<2x16xf32>
    %14 = vector.broadcast %12 : f32 to vector<2x16xf32>
    %15 = arith.mulf %14, %13 : vector<2x16xf32>
    %16 = arith.addf %11, %15 : vector<2x16xf32>
    %c1 = arith.constant 1 : index
    %17 = memref.load %arg2[%c1] : memref<14xf32, #tpu.memory_space<smem>>
    %18 = vector.extract_strided_slice %5 {offsets = [0, 1], sizes = [2, 16], strides = [1, 1]} : vector<2x22xf32> to vector<2x16xf32>
    %19 = vector.broadcast %17 : f32 to vector<2x16xf32>
    %20 = arith.mulf %19, %18 : vector<2x16xf32>
    %21 = arith.addf %16, %20 : vector<2x16xf32>
    %c8 = arith.constant 8 : index
    %22 = memref.load %arg2[%c8] : memref<14xf32, #tpu.memory_space<smem>>
    %23 = vector.extract_strided_slice %6 {offsets = [0, 1], sizes = [2, 16], strides = [1, 1]} : vector<2x22xf32> to vector<2x16xf32>
    %24 = vector.broadcast %22 : f32 to vector<2x16xf32>
    %25 = arith.mulf %24, %23 : vector<2x16xf32>
    %26 = arith.addf %21, %25 : vector<2x16xf32>
    %c2 = arith.constant 2 : index
    %27 = memref.load %arg2[%c2] : memref<14xf32, #tpu.memory_space<smem>>
    %28 = vector.extract_strided_slice %5 {offsets = [0, 2], sizes = [2, 16], strides = [1, 1]} : vector<2x22xf32> to vector<2x16xf32>
    %29 = vector.broadcast %27 : f32 to vector<2x16xf32>
    %30 = arith.mulf %29, %28 : vector<2x16xf32>
    %31 = arith.addf %26, %30 : vector<2x16xf32>
    %c9 = arith.constant 9 : index
    %32 = memref.load %arg2[%c9] : memref<14xf32, #tpu.memory_space<smem>>
    %33 = vector.extract_strided_slice %6 {offsets = [0, 2], sizes = [2, 16], strides = [1, 1]} : vector<2x22xf32> to vector<2x16xf32>
    %34 = vector.broadcast %32 : f32 to vector<2x16xf32>
    %35 = arith.mulf %34, %33 : vector<2x16xf32>
    %36 = arith.addf %31, %35 : vector<2x16xf32>
    %c3 = arith.constant 3 : index
    %37 = memref.load %arg2[%c3] : memref<14xf32, #tpu.memory_space<smem>>
    %38 = vector.extract_strided_slice %5 {offsets = [0, 3], sizes = [2, 16], strides = [1, 1]} : vector<2x22xf32> to vector<2x16xf32>
    %39 = vector.broadcast %37 : f32 to vector<2x16xf32>
    %40 = arith.mulf %39, %38 : vector<2x16xf32>
    %41 = arith.addf %36, %40 : vector<2x16xf32>
    %c10 = arith.constant 10 : index
    %42 = memref.load %arg2[%c10] : memref<14xf32, #tpu.memory_space<smem>>
    %43 = vector.extract_strided_slice %6 {offsets = [0, 3], sizes = [2, 16], strides = [1, 1]} : vector<2x22xf32> to vector<2x16xf32>
    %44 = vector.broadcast %42 : f32 to vector<2x16xf32>
    %45 = arith.mulf %44, %43 : vector<2x16xf32>
    %46 = arith.addf %41, %45 : vector<2x16xf32>
    %c4 = arith.constant 4 : index
    %47 = memref.load %arg2[%c4] : memref<14xf32, #tpu.memory_space<smem>>
    %48 = vector.extract_strided_slice %5 {offsets = [0, 4], sizes = [2, 16], strides = [1, 1]} : vector<2x22xf32> to vector<2x16xf32>
    %49 = vector.broadcast %47 : f32 to vector<2x16xf32>
    %50 = arith.mulf %49, %48 : vector<2x16xf32>
    %51 = arith.addf %46, %50 : vector<2x16xf32>
    %c11 = arith.constant 11 : index
    %52 = memref.load %arg2[%c11] : memref<14xf32, #tpu.memory_space<smem>>
    %53 = vector.extract_strided_slice %6 {offsets = [0, 4], sizes = [2, 16], strides = [1, 1]} : vector<2x22xf32> to vector<2x16xf32>
    %54 = vector.broadcast %52 : f32 to vector<2x16xf32>
    %55 = arith.mulf %54, %53 : vector<2x16xf32>
    %56 = arith.addf %51, %55 : vector<2x16xf32>
    %c5 = arith.constant 5 : index
    %57 = memref.load %arg2[%c5] : memref<14xf32, #tpu.memory_space<smem>>
    %58 = vector.extract_strided_slice %5 {offsets = [0, 5], sizes = [2, 16], strides = [1, 1]} : vector<2x22xf32> to vector<2x16xf32>
    %59 = vector.broadcast %57 : f32 to vector<2x16xf32>
    %60 = arith.mulf %59, %58 : vector<2x16xf32>
    %61 = arith.addf %56, %60 : vector<2x16xf32>
    %c12 = arith.constant 12 : index
    %62 = memref.load %arg2[%c12] : memref<14xf32, #tpu.memory_space<smem>>
    %63 = vector.extract_strided_slice %6 {offsets = [0, 5], sizes = [2, 16], strides = [1, 1]} : vector<2x22xf32> to vector<2x16xf32>
    %64 = vector.broadcast %62 : f32 to vector<2x16xf32>
    %65 = arith.mulf %64, %63 : vector<2x16xf32>
    %66 = arith.addf %61, %65 : vector<2x16xf32>
    %c6 = arith.constant 6 : index
    %67 = memref.load %arg2[%c6] : memref<14xf32, #tpu.memory_space<smem>>
    %68 = vector.extract_strided_slice %5 {offsets = [0, 6], sizes = [2, 16], strides = [1, 1]} : vector<2x22xf32> to vector<2x16xf32>
    %69 = vector.broadcast %67 : f32 to vector<2x16xf32>
    %70 = arith.mulf %69, %68 : vector<2x16xf32>
    %71 = arith.addf %66, %70 : vector<2x16xf32>
    %c13 = arith.constant 13 : index
    %72 = memref.load %arg2[%c13] : memref<14xf32, #tpu.memory_space<smem>>
    %73 = vector.extract_strided_slice %6 {offsets = [0, 6], sizes = [2, 16], strides = [1, 1]} : vector<2x22xf32> to vector<2x16xf32>
    %74 = vector.broadcast %72 : f32 to vector<2x16xf32>
    %75 = arith.mulf %74, %73 : vector<2x16xf32>
    %76 = arith.addf %71, %75 : vector<2x16xf32>
    %77 = arith.negf %76 : vector<2x16xf32>
    %78 = math.exp %77 : vector<2x16xf32>
    %cst_6 = arith.constant 1.000000e+00 : f32
    %79 = vector.broadcast %cst_6 : f32 to vector<2x16xf32>
    %80 = arith.addf %79, %78 : vector<2x16xf32>
    %81 = arith.divf %79, %80 : vector<2x16xf32>
    %c0_7 = arith.constant 0 : index
    %c0_8 = arith.constant 0 : index
    %82 = vector.load %arg3[%c0_7, %c0_8] : memref<2x16xf32, #tpu.memory_space<vmem>>, vector<2x16xf32>
    tpu.vector_store %arg3[%c0_7, %c0_8], %81 {strides = array<i32>} : memref<2x16xf32, #tpu.memory_space<vmem>>, vector<2x16xf32>,
    return
  }
  func.func @transform_0(%arg0: i32) -> (i32, i32, i32) {
    %c0_i32 = arith.constant 0 : i32
    %c0_i32_0 = arith.constant 0 : i32
    %c0_i32_1 = arith.constant 0 : i32
    return %arg0, %c0_i32, %c0_i32_0 : i32, i32, i32
  }
  func.func @transform_1(%arg0: i32) -> i32 {
    %c0_i32 = arith.constant 0 : i32
    %c0_i32_0 = arith.constant 0 : i32
    return %c0_i32 : i32
  }
  func.func @transform_2(%arg0: i32) -> (i32, i32) {
    %c0_i32 = arith.constant 0 : i32
    %c0_i32_0 = arith.constant 0 : i32
    return %arg0, %c0_i32 : i32, i32
  }
}

</mosaic_0001>

<llo_original>
// kernel: tpu_custom_call.1
$region0: #{tpu_custom_call.1}
  #allocation0 [shape = 'u32[]', space=smem, size = 0x4, offset = 0x4, fixed_abs, tag = 'smem constant byte address 0x4 - core index']
  #allocation1 [shape = 'u32[144,128]{1,0:T(1,128)}', space=vmem, size = 0x12000, scoped, tag = 'internal scratch']
  %s0 = inlined_call_operand.hbm [shape: f32[2,4,16], index: 0, kind: input, shape index: {}]
  %s1 = inlined_call_operand.vmem [shape: f32[14], index: 1, kind: input, shape index: {}]
  %s2 = inlined_call_operand.hbm [shape: f32[2,16], index: 2, kind: output, shape index: {}]
  %s3 = sld [smem:[#allocation0]]
  $region26: #{tpu_custom_call.1} parent=0
    _
  %s5 = ssub.s32 1, %s3
  %s6 = scalar_select 0, %s5, %s3
  $region1: #{tpu_custom_call.1} parent=0
    #allocation2 [shape = 'u8[4096]{0}', space=vmem, size = 0x1000, scoped, tag = 'input window, operand 0, single buffered']
    #allocation3 [shape = 's32[1]{0}', space=sflag, size = 0x4, scoped, tag = 'scoped memory for tpu_custom_call.1']
    #allocation4 [shape = 's32[1]{0}', space=sflag, size = 0x4, scoped, tag = 'scoped memory for tpu_custom_call.1']
    #allocation5 [shape = 's32[1]{0}', space=sflag, size = 0x4, scoped, tag = 'scoped memory for tpu_custom_call.1']
    #allocation6 [shape = 'u8[512]{0}', space=smem, size = 0x200, scoped, tag = 'input window, operand 1, single buffered']
    #allocation7 [shape = 'u8[1024]{0}', space=vmem, size = 0x400, scoped, tag = 'output window, operand 0, single buffered']
    %7 = vsyncpa [#allocation3], 0
    %8 = vsyncpa [#allocation5], 0
    %9 = vsyncpa [#allocation4], 0
    // Predicated region
    $region2: #{tpu_custom_call.1} parent=1 // pred_check
      _
    $region3: #{tpu_custom_call.1} parent=1 // pred_check_branch
      %11 = sbr.rel (0) target = $region5
    $region4: #{tpu_custom_call.1} parent=1 // pred_region
      %s13 = ssub.s32 128, 128
      %14 = vsyncadd [#allocation3], %s13
      %s15 = sshll.u32 [#allocation2], 4
      %s16 = int_to_ptr.vmem [resolvable:$true] %s15
      %21 = dma.hbm_to_vmem [thread:$0]  %s0, 128, %s16, [#allocation3], 64, 64, 4
    $region5: #{tpu_custom_call.1} parent=1 // pred_fallthru
      _
    // Predicated region
    $region6: #{tpu_custom_call.1} parent=1 // pred_check
      _
    $region7: #{tpu_custom_call.1} parent=1 // pred_check_branch
      %23 = sbr.rel (0) target = $region9
    $region8: #{tpu_custom_call.1} parent=1 // pred_region
      %s25 = ssub.s32 16, 16
      %26 = vsyncadd [#allocation5], %s25
      %s28 = sshll.u32 %s1, 4
      %s29 = int_to_ptr.vmem [resolvable:$true] %s28
      %31 = dma.vmem_to_smem %s29, 16, [#allocation6], [#allocation5]
    $region9: #{tpu_custom_call.1} parent=1 // pred_fallthru
      _
    // Predicated region
    $region10: #{tpu_custom_call.1} parent=1 // pred_check
      _
    $region11: #{tpu_custom_call.1} parent=1 // pred_check_branch
      %33 = sbr.rel (0) target = $region13
    $region12: #{tpu_custom_call.1} parent=1 // pred_region
      %34 = dma.done [#allocation3], 128
    $region13: #{tpu_custom_call.1} parent=1 // pred_fallthru
      _
    // Predicated region
    $region14: #{tpu_custom_call.1} parent=1 // pred_check
      _
    $region15: #{tpu_custom_call.1} parent=1 // pred_check_branch
      %36 = sbr.rel (0) target = $region17
    $region16: #{tpu_custom_call.1} parent=1 // pred_region
      %37 = dma.done [#allocation5], 16
    $region17: #{tpu_custom_call.1} parent=1 // pred_fallthru
      _
    %38 = sfence
    %v39 = vld [vmem:[#allocation2] sm:$0xf]
    %v40 = vld [vmem:[#allocation2 + $0x4] sm:$0xf]
    %vm41 = vcmask 125952
    %v42 = vsel %vm41, %v39, 0.0
    %v43 = vrot.slane %v42, 4
    %v44 = vadd.f32 %v42, %v43
    %v45 = vrot.slane %v44, 2
    %v46 = vadd.f32 %v44, %v45
    %v47 = vrot.slane %v46, 1
    %v48 = vadd.f32 %v46, %v47
    %v49 = vsel %vm41, %v40, 0.0
    %v50 = vrot.slane %v49, 4
    %v51 = vadd.f32 %v49, %v50
    %v52 = vrot.slane %v51, 2
    %v53 = vadd.f32 %v51, %v52
    %v54 = vrot.slane %v53, 1
    %v55 = vadd.f32 %v53, %v54
    %v56 = vsel %vm41, %v39, -inf
    %v57 = vrot.slane %v56, 4
    %v58 = vmax.f32 %v56, %v57
    %v59 = vrot.slane %v58, 2
    %v60 = vmax.f32 %v58, %v59
    %v61 = vrot.slane %v60, 1
    %v62 = vmax.f32 %v60, %v61
    %v63 = vsel %vm41, %v40, -inf
    %v64 = vrot.slane %v63, 4
    %v65 = vmax.f32 %v63, %v64
    %v66 = vrot.slane %v65, 2
    %v67 = vmax.f32 %v65, %v66
    %v68 = vrot.slane %v67, 1
    %v69 = vmax.f32 %v67, %v68
    %vm72 = vcmask 1041409
    %v73 = vsel %vm72, %v55, %v48
    %74 = vrot.lane.b32.xlu0 %v73, 3
    %v75 = vpop.permute.xlu0 %74
    %vm77 = vcmask 23552
    %v78 = vsel %vm77, 0.0, %v75
    %vm79 = vcmask 154624
    %v80 = vsel %vm79, %v78, 0.0
    %v83 = vsel %vm72, %v69, %v62
    %84 = vrot.lane.b32.xlu0 %v83, 3
    %v85 = vpop.permute.xlu0 %84
    %v87 = vsel %vm77, 0.0, %v85
    %v88 = vsel %vm79, %v87, 0.0
    %s89 = sld [smem:[#allocation6]]
    %v90 = vstv %s89
    %v91 = vmul.f32 %v90, %v80
    %v92 = vadd.f32 %v91, 0.0
    %s93 = sld [smem:[#allocation6 + $0x7]]
    %v94 = vstv %s93
    %v95 = vmul.f32 %v94, %v88
    %v96 = vadd.f32 %v92, %v95
    %s97 = sld [smem:[#allocation6 + $0x1]]
    %v98 = vstv %s97
    %v99 = vmul.f32 %v98, %v80
    %101 = vrot.lane.b32.xlu0 %v99, 127
    %v102 = vpop.permute.xlu0 %101
    %v104 = vadd.f32 %v96, %v102
    %s105 = sld [smem:[#allocation6 + $0x8]]
    %v106 = vstv %s105
    %v107 = vmul.f32 %v106, %v88
    %109 = vrot.lane.b32.xlu0 %v107, 127
    %v110 = vpop.permute.xlu0 %109
    %v112 = vadd.f32 %v104, %v110
    %s113 = sld [smem:[#allocation6 + $0x2]]
    %v114 = vstv %s113
    %v115 = vmul.f32 %v114, %v80
    %117 = vrot.lane.b32.xlu0 %v115, 126
    %v118 = vpop.permute.xlu0 %117
    %v120 = vadd.f32 %v112, %v118
    %s121 = sld [smem:[#allocation6 + $0x9]]
    %v122 = vstv %s121
    %v123 = vmul.f32 %v122, %v88
    %125 = vrot.lane.b32.xlu0 %v123, 126
    %v126 = vpop.permute.xlu0 %125
    %v128 = vadd.f32 %v120, %v126
    %s129 = sld [smem:[#allocation6 + $0x3]]
    %v130 = vstv %s129
    %v131 = vmul.f32 %v130, %v80
    %133 = vrot.lane.b32.xlu0 %v131, 125
    %v134 = vpop.permute.xlu0 %133
    %v136 = vadd.f32 %v128, %v134
    %s137 = sld [smem:[#allocation6 + $0xa]]
    %v138 = vstv %s137
    %v139 = vmul.f32 %v138, %v88
    %141 = vrot.lane.b32.xlu0 %v139, 125
    %v142 = vpop.permute.xlu0 %141
    %v144 = vadd.f32 %v136, %v142
    %s145 = sld [smem:[#allocation6 + $0x4]]
    %v146 = vstv %s145
    %v147 = vmul.f32 %v146, %v80
    %149 = vrot.lane.b32.xlu0 %v147, 124
    %v150 = vpop.permute.xlu0 %149
    %v152 = vadd.f32 %v144, %v150
    %s153 = sld [smem:[#allocation6 + $0xb]]
    %v154 = vstv %s153
    %v155 = vmul.f32 %v154, %v88
    %157 = vrot.lane.b32.xlu0 %v155, 124
    %v158 = vpop.permute.xlu0 %157
    %v160 = vadd.f32 %v152, %v158
    %s161 = sld [smem:[#allocation6 + $0x5]]
    %v162 = vstv %s161
    %v163 = vmul.f32 %v162, %v80
    %165 = vrot.lane.b32.xlu0 %v163, 123
    %v166 = vpop.permute.xlu0 %165
    %v168 = vadd.f32 %v160, %v166
    %s169 = sld [smem:[#allocation6 + $0xc]]
    %v170 = vstv %s169
    %v171 = vmul.f32 %v170, %v88
    %173 = vrot.lane.b32.xlu0 %v171, 123
    %v174 = vpop.permute.xlu0 %173
    %v176 = vadd.f32 %v168, %v174
    %s177 = sld [smem:[#allocation6 + $0x6]]
    %v178 = vstv %s177
    %v179 = vmul.f32 %v178, %v80
    %181 = vrot.lane.b32.xlu0 %v179, 122
    %v182 = vpop.permute.xlu0 %181
    %v184 = vadd.f32 %v176, %v182
    %s185 = sld [smem:[#allocation6 + $0xd]]
    %v186 = vstv %s185
    %v187 = vmul.f32 %v186, %v88
    %189 = vrot.lane.b32.xlu0 %v187, 122
    %v190 = vpop.permute.xlu0 %189
    %v192 = vadd.f32 %v184, %v190
    %v193 = vxor.u32 %v192, 2147483648
    %v194 = vmul.f32 %v193, 1.442695
    %v195 = vpow.pop %v194
    %v196 = vadd.f32 %v195, 1.0
    %v197 = vrcp.pop %v196
    %v198 = vmul.f32 1.0, %v197
    %vm199 = vcmask 123904
    %200 = vst.msk [vmem:[#allocation7] sm:$0x3] %vm199, %v198
    // Predicated region
    $region18: #{tpu_custom_call.1} parent=1 // pred_check
      _
    $region19: #{tpu_custom_call.1} parent=1 // pred_check_branch
      %202 = sbr.rel (0) target = $region21
    $region20: #{tpu_custom_call.1} parent=1 // pred_region
      %s204 = ssub.s32 32, 32
      %205 = vsyncadd [#allocation4], %s204
      %s207 = sshll.u32 [#allocation7], 4
      %s208 = int_to_ptr.vmem [resolvable:$true] %s207
      %210 = dma.vmem_to_hbm [thread:$0]  %s208, 32, %s2, [#allocation4]
    $region21: #{tpu_custom_call.1} parent=1 // pred_fallthru
      _
    // Predicated region
    $region22: #{tpu_custom_call.1} parent=1 // pred_check
      _
    $region23: #{tpu_custom_call.1} parent=1 // pred_check_branch
      %212 = sbr.rel (0) target = $region25
    $region24: #{tpu_custom_call.1} parent=1 // pred_region
      %213 = dma.done [#allocation4], 32
    $region25: #{tpu_custom_call.1} parent=1 // pred_fallthru
      _
    %214 = vsyncpa [#allocation3], 1
    %215 = vsyncpa [#allocation4], 1
    %216 = vsyncpa [#allocation5], 1

</llo_original>
